<compile_context>
chip_gen: v6e
topology: v6e:2x2x1
jax: 0.10.0
libtpu: 0.0.40
codegen_flags: <defaults>
</compile_context>

<pallas_src>
import functools

import jax
import jax.numpy as jnp
from jax.experimental import pallas as pl
from jax.experimental.pallas import tpu as pltpu


def _round_up(x, m):
    return (x + m - 1) // m * m


def _make_fused_mlp_kernel(num_layers, in_f, padded_dim):
    """Kernel body. refs: (x, w_stack_block, b_stack_block, out, h_scratch)."""

    def kernel(x_ref, w_ref, b_ref, o_ref, h_ref):
        layer = pl.program_id(0)

        # First grid step: load x into the f32 VMEM scratch, zero the padding
        # lanes (they must not be garbage/NaN even though padded weight rows
        # are zero).
        @pl.when(layer == 0)
        def _init():
            if in_f == padded_dim:
                h_ref[...] = x_ref[...].astype(jnp.float32)
            else:
                h_ref[...] = jnp.zeros_like(h_ref)
                h_ref[:, :in_f] = x_ref[...].astype(jnp.float32)

        # bf16 x bf16 -> f32 on the MXU; bias add in f32 on the VPU.
        h = h_ref[...]
        y = jnp.dot(h.astype(jnp.bfloat16), w_ref[0],
                    preferred_element_type=jnp.float32)
        y = y + b_ref[0]
        h_ref[...] = y

        # Output block keeps the same index across the layer axis, so it is
        # VMEM-resident; write it once at the last layer.
        @pl.when(layer == num_layers - 1)
        def _finalize():
            o_ref[...] = y.astype(o_ref.dtype)

    return kernel


def init_mlp_params(key, input_size, hidden_sizes, output_size, dtype=jnp.float32):
    """Deterministic init mirroring nn.Linear's U(-1/sqrt(fan_in), 1/sqrt(fan_in)).

    Returned in PyTorch layout: w is [out, in], b is [out]."""
    sizes = [input_size] + list(hidden_sizes) + [output_size]
    params = []
    for i in range(len(sizes) - 1):
        fan_in, fan_out = sizes[i], sizes[i + 1]
        key, wk, bk = jax.random.split(key, 3)
        bound = 1.0 / jnp.sqrt(jnp.asarray(fan_in, dtype))
        w = jax.random.uniform(wk, (fan_out, fan_in), dtype, -bound, bound)
        b = jax.random.uniform(bk, (fan_out,), dtype, -bound, bound)
        params.append((w, b))
    return params


def prepare_fused_params(params, weight_dtype=jnp.bfloat16, lane=None):
    """One-time prep (outside the jitted forward):

    * transpose every weight to [in, out] so the MXU consumes it directly,
    * zero-pad all feature dims to a common lane-aligned width P,
    * stack into W [L, P, P] (bf16) and B [L, 1, P] (f32)."""
    sizes = [params[0][0].shape[1]] + [w.shape[0] for w, _ in params]
    max_feat = max(sizes)
    if lane is None:
        # v6e/v7x MXU is 2x256^2: only adopt 256-wide padding once the real
        # feature dims reach 256 (below that it just wastes FLOPs/VMEM, and
        # v5e's 4x128^2 MXU prefers 128 anyway).
        lane = 256 if max_feat >= 256 else 128
    padded_dim = _round_up(max_feat, lane)
    num_layers = len(params)

    w_stack = jnp.zeros((num_layers, padded_dim, padded_dim), weight_dtype)
    b_stack = jnp.zeros((num_layers, 1, padded_dim), jnp.float32)
    for l, (w, b) in enumerate(params):
        out_f, in_f = w.shape
        w_stack = w_stack.at[l, :in_f, :out_f].set(
            jnp.transpose(w).astype(weight_dtype))
        b_stack = b_stack.at[l, 0, :out_f].set(b.astype(jnp.float32))
    return w_stack, b_stack


@functools.partial(jax.jit, static_argnames=("output_size",))
def mlp_forward_fused(x, w_stack, b_stack, output_size):
    """Whole-MLP forward in one Pallas kernel.  x: [batch, input_size] f32."""
    batch, in_f = x.shape
    num_layers, padded_dim, _ = w_stack.shape

    batch_p = _round_up(max(batch, 1), 8)
    if batch_p != batch:
        x = jnp.zeros((batch_p, in_f), x.dtype).at[:batch].set(x)

    # Advisory cost estimate (counts the padded MXU work actually executed).
    flops = 2 * batch_p * padded_dim * padded_dim * num_layers
    bytes_accessed = (x.size * x.dtype.itemsize
                      + w_stack.size * w_stack.dtype.itemsize
                      + b_stack.size * b_stack.dtype.itemsize
                      + batch_p * padded_dim * x.dtype.itemsize)

    # Explicit scoped-VMEM budget from the (double-buffered) block sizes, with
    # generous headroom; clamped well inside every generation's capacity
    # (v5e 16 MiB default scoped limit, v7x 64 MiB physical).
    resident_bytes = (
        2 * padded_dim * padded_dim * w_stack.dtype.itemsize   # weight block x2
        + 2 * padded_dim * b_stack.dtype.itemsize              # bias block x2
        + 2 * batch_p * in_f * x.dtype.itemsize                # x block x2
        + 2 * batch_p * padded_dim * 4                         # output block x2
        + batch_p * padded_dim * 4)                            # f32 scratch
    vmem_limit = int(min(max(2 * resident_bytes, 8 << 20), 32 << 20))

    out_padded = pl.pallas_call(
        _make_fused_mlp_kernel(num_layers, in_f, padded_dim),
        out_shape=jax.ShapeDtypeStruct((batch_p, padded_dim), x.dtype),
        grid_spec=pltpu.PrefetchScalarGridSpec(
            num_scalar_prefetch=0,
            grid=(num_layers,),
            in_specs=[
                # x: full (unpadded-K) block, same for every layer step.
                pl.BlockSpec((batch_p, in_f), lambda l: (0, 0)),
                # Per-layer weight / bias blocks -> auto double-buffered DMA.
                pl.BlockSpec((1, padded_dim, padded_dim), lambda l: (l, 0, 0)),
                pl.BlockSpec((1, 1, padded_dim), lambda l: (l, 0, 0)),
            ],
            out_specs=pl.BlockSpec((batch_p, padded_dim), lambda l: (0, 0)),
            scratch_shapes=[pltpu.VMEM((batch_p, padded_dim), jnp.float32)],
        ),
        compiler_params=pltpu.CompilerParams(
            dimension_semantics=("arbitrary",),   # layer axis is sequential
            vmem_limit_bytes=vmem_limit,
        ),
        cost_estimate=pl.CostEstimate(
            flops=flops, transcendentals=0, bytes_accessed=bytes_accessed),
    )(x, w_stack, b_stack)

    # Tiny slice back to the real shape (plain JAX glue, outside the kernel).
    return out_padded[:batch, :output_size]


if __name__ == "__main__":
    key = jax.random.PRNGKey(0)
    key, xk = jax.random.split(key)

    batch = 8
    input_size = 32
    hidden_sizes = [64, 32]
    output_size = 16

    x = jax.random.normal(xk, (batch, input_size), dtype=jnp.float32)
    params = init_mlp_params(key, input_size, hidden_sizes, output_size)
    w_stack, b_stack = prepare_fused_params(params)   # one-time prep, bf16 weights

    out = mlp_forward_fused(x, w_stack, b_stack, output_size)
    jax.block_until_ready(out)

    # Cross-check against a plain-JAX f32 reference of the same math (PyTorch
    # layout).  bf16 weights/activations in the kernel -> loosened tolerance.
    ref = x
    for w, b in params:
        ref = ref @ w.T + b
    assert out.shape == (batch, output_size)
    assert jnp.allclose(out, ref, atol=2e-2, rtol=2e-2), float(
        jnp.max(jnp.abs(out - ref)))

    print("KERNEL_OK")
</pallas_src>

<mosaic_0001>
module attributes {stable_mosaic.version = 11 : i64} {
  func.func @kernel(%arg0: i32, %arg1: memref<8x32xf32, #tpu.memory_space<vmem>>, %arg2: memref<1x128x128xbf16, #tpu.memory_space<vmem>>, %arg3: memref<1x1x128xf32, #tpu.memory_space<vmem>>, %arg4: memref<8x128xf32, #tpu.memory_space<vmem>>, %arg5: memref<8x128xf32, #tpu.memory_space<vmem>>) attributes {dimension_semantics = [#tpu.dimension_semantics<arbitrary>], iteration_bounds = array<i64: 3>, scalar_prefetch = 0 : i64, scratch_operands = 1 : i64, tpu.core_type = #tpu.core_type<tc>, window_params = [{pipeline_mode = #tpu.pipeline_mode<synchronous>, transform_indices = @transform_0, window_bounds = array<i64: 8, 32>}, {transform_indices = @transform_1, window_bounds = array<i64: 1, 128, 128>}, {transform_indices = @transform_2, window_bounds = array<i64: 1, 1, 128>}, {pipeline_mode = #tpu.pipeline_mode<synchronous>, transform_indices = @transform_3, window_bounds = array<i64: 8, 128>}]} {
    %c0_i32 = arith.constant 0 : i32
    %0 = arith.cmpi eq, %arg0, %c0_i32 : i32
    %1 = arith.extui %0 : i1 to i32
    %c0_i32_0 = arith.constant 0 : i32
    %2 = arith.cmpi ne, %1, %c0_i32_0 : i32
    scf.if %2 {
      %cst_11 = arith.constant 0.000000e+00 : f32
      %16 = vector.broadcast %cst_11 : f32 to vector<8x128xf32>
      %c0_12 = arith.constant 0 : index
      %c0_13 = arith.constant 0 : index
      %17 = vector.load %arg5[%c0_12, %c0_13] : memref<8x128xf32, #tpu.memory_space<vmem>>, vector<8x128xf32>
      tpu.vector_store %arg5[%c0_12, %c0_13], %16 {strides = array<i32>} : memref<8x128xf32, #tpu.memory_space<vmem>>, vector<8x128xf32>,
      %c0_14 = arith.constant 0 : index
      %c0_15 = arith.constant 0 : index
      %18 = vector.load %arg1[%c0_14, %c0_15] : memref<8x32xf32, #tpu.memory_space<vmem>>, vector<8x32xf32>
      %c0_16 = arith.constant 0 : index
      %c0_17 = arith.constant 0 : index
      %19 = vector.load %arg5[%c0_16, %c0_17] : memref<8x128xf32, #tpu.memory_space<vmem>>, vector<8x32xf32>
      tpu.vector_store %arg5[%c0_16, %c0_17], %18 {strides = array<i32>} : memref<8x128xf32, #tpu.memory_space<vmem>>, vector<8x32xf32>,
    } else {
    }
    %c0 = arith.constant 0 : index
    %c0_1 = arith.constant 0 : index
    %3 = vector.load %arg5[%c0, %c0_1] : memref<8x128xf32, #tpu.memory_space<vmem>>, vector<8x128xf32>
    %4 = arith.truncf %3 : vector<8x128xf32> to vector<8x128xbf16>
    %c0_2 = arith.constant 0 : index
    %c0_3 = arith.constant 0 : index
    %c0_4 = arith.constant 0 : index
    %5 = vector.load %arg2[%c0_2, %c0_3, %c0_4] : memref<1x128x128xbf16, #tpu.memory_space<vmem>>, vector<1x128x128xbf16>
    %6 = vector.shape_cast %5 : vector<1x128x128xbf16> to vector<128x128xbf16>
    %cst = arith.constant dense<0.000000e+00> : vector<8x128xf32>
    %7 = tpu.matmul %4, %6, %cst {dimension_numbers = #tpu.dot_dimension_numbers<[1], [0], [0], [1], [0, 0, 1, 1], [], []>} : vector<8x128xbf16>, vector<128x128xbf16>, vector<8x128xf32> -> vector<8x128xf32>
    %c0_5 = arith.constant 0 : index
    %c0_6 = arith.constant 0 : index
    %c0_7 = arith.constant 0 : index
    %8 = vector.load %arg3[%c0_5, %c0_6, %c0_7] : memref<1x1x128xf32, #tpu.memory_space<vmem>>, vector<1x1x128xf32>
    %9 = vector.shape_cast %8 : vector<1x1x128xf32> to vector<1x128xf32>
    %10 = vector.broadcast %9 : vector<1x128xf32> to vector<8x128xf32>
    %11 = arith.addf %7, %10 : vector<8x128xf32>
    %c0_8 = arith.constant 0 : index
    %c0_9 = arith.constant 0 : index
    %12 = vector.load %arg5[%c0_8, %c0_9] : memref<8x128xf32, #tpu.memory_space<vmem>>, vector<8x128xf32>
    tpu.vector_store %arg5[%c0_8, %c0_9], %11 {strides = array<i32>} : memref<8x128xf32, #tpu.memory_space<vmem>>, vector<8x128xf32>,
    %c2_i32 = arith.constant 2 : i32
    %13 = arith.cmpi eq, %arg0, %c2_i32 : i32
    %14 = arith.extui %13 : i1 to i32
    %c0_i32_10 = arith.constant 0 : i32
    %15 = arith.cmpi ne, %14, %c0_i32_10 : i32
    scf.if %15 {
      %c0_11 = arith.constant 0 : index
      %c0_12 = arith.constant 0 : index
      %16 = vector.load %arg4[%c0_11, %c0_12] : memref<8x128xf32, #tpu.memory_space<vmem>>, vector<8x128xf32>
      tpu.vector_store %arg4[%c0_11, %c0_12], %11 {strides = array<i32>} : memref<8x128xf32, #tpu.memory_space<vmem>>, vector<8x128xf32>,
    } else {
    }
    return
  }
  func.func @transform_0(%arg0: i32) -> (i32, i32) {
    %c0_i32 = arith.constant 0 : i32
    %c0_i32_0 = arith.constant 0 : i32
    %c0_i32_1 = arith.constant 0 : i32
    return %c0_i32, %c0_i32_0 : i32, i32
  }
  func.func @transform_1(%arg0: i32) -> (i32, i32, i32) {
    %c0_i32 = arith.constant 0 : i32
    %c0_i32_0 = arith.constant 0 : i32
    %c0_i32_1 = arith.constant 0 : i32
    return %arg0, %c0_i32, %c0_i32_0 : i32, i32, i32
  }
  func.func @transform_2(%arg0: i32) -> (i32, i32, i32) {
    %c0_i32 = arith.constant 0 : i32
    %c0_i32_0 = arith.constant 0 : i32
    %c0_i32_1 = arith.constant 0 : i32
    return %arg0, %c0_i32, %c0_i32_0 : i32, i32, i32
  }
  func.func @transform_3(%arg0: i32) -> (i32, i32) {
    %c0_i32 = arith.constant 0 : i32
    %c0_i32_0 = arith.constant 0 : i32
    %c0_i32_1 = arith.constant 0 : i32
    return %c0_i32, %c0_i32_0 : i32, i32
  }
}

</mosaic_0001>

<llo_original>
// kernel: mlp_forward_fused.1
$region0: #{mlp_forward_fused.1}
  #allocation0 [shape = 'u32[]', space=smem, size = 0x4, offset = 0x4, fixed_abs, tag = 'smem constant byte address 0x4 - core index']
  #allocation1 [shape = 'u32[144,128]{1,0:T(1,128)}', space=vmem, size = 0x12000, scoped, tag = 'internal scratch']
  #allocation2 [shape = 'f32[8,128]{1,0:T(8,128)}', space=vmem, size = 0x1000, scoped, tag = 'scratch operand']
  %s0 = inlined_call_operand.hbm [shape: f32[8,32], index: 0, kind: input, shape index: {}]
  %s1 = inlined_call_operand.hbm [shape: bf16[3,128,128], index: 1, kind: input, shape index: {}]
  %s2 = inlined_call_operand.vmem [shape: f32[3,1,128], index: 2, kind: input, shape index: {}]
  %s3 = inlined_call_operand.hbm [shape: f32[8,128], index: 3, kind: output, shape index: {}]
  %s4 = sld [smem:[#allocation0]]
  $region61: #{mlp_forward_fused.1} parent=0
    _
  %s6 = ssub.s32 1, %s4
  %s7 = scalar_select 0, %s6, %s4
  $region1: #{mlp_forward_fused.1} parent=0
    #allocation3 [shape = 'u8[4096]{0}', space=vmem, size = 0x1000, scoped, tag = 'input window, operand 0, single buffered']
    #allocation4 [shape = 's32[2]{0}', space=sflag, size = 0x8, scoped, tag = 'scoped memory for mlp_forward_fused.1']
    #allocation5 [shape = 's32[2]{0}', space=sflag, size = 0x8, scoped, tag = 'scoped memory for mlp_forward_fused.1']
    #allocation6 [shape = 'u8[65536]{0}', space=vmem, size = 0x10000, scoped, tag = 'input window, operand 1']
    #allocation7 [shape = 's32[2]{0}', space=sflag, size = 0x8, scoped, tag = 'scoped memory for mlp_forward_fused.1']
    #allocation8 [shape = 'u8[4096]{0}', space=vmem, size = 0x1000, scoped, tag = 'output window, operand 0, single buffered']
    %8 = vsyncpa [#allocation4], 0
    %9 = vsyncpa [#allocation7], 0
    %s10 = scalar_lea.sflag [#allocation7], 1
    %11 = vsyncpa %s10, 0
    %12 = vsyncpa [#allocation5], 0
    loop: start=0, step=1, limit=5
    $region2: #{mlp_forward_fused.1} parent=1 // loop_pre_header
      _
    $region3: #{mlp_forward_fused.1} parent=1 // loop_header
      %s14 = sphi 0, %s18
      %p15 = scmp.ge.s32.totalorder %s14, 5
      %s22 = sphi 0, %s22
      %s24 = sphi 0, %s22
      %s25 = sphi 0, %s24
      %s39 = sphi 0, %s25
      %s45 = sphi 0, %s47
      %s48 = sphi 0, %s45
      %s49 = sphi 0, %s48
      %s65 = sphi 0, %s49
      %s71 = sphi 0, %s73
      %s74 = sphi 0, %s71
      %s75 = sphi 0, %s74
      %s91 = sphi 0, %s75
      %s95 = sphi 0, %s95
      %s97 = sphi 0, %s95
      %s98 = sphi 0, %s97
      %s112 = sphi 0, %s98
    $region4: #{mlp_forward_fused.1} parent=1 // loop_header_branch
      %17 = sbr.rel (%p15) target = $region8
    $region5: #{mlp_forward_fused.1} parent=1 // loop_body
      %s19 = ssub.s32 %s14, 1
      %s20 = ssub.s32 %s14, 2
      %s21 = sadd.s32 %s14, 1
      %s23 = sadd.s32 %s22, 1
      %p26 = scmp.eq.s32.totalorder %s14, 2
      %p27 = scmp.ne.s32.totalorder %s22, %s24
      %p28 = scmp.eq.s32.totalorder %s14, 0
      %p29 = por %p27, %p28
      %p30 = scmp.ne.s32.totalorder %s22, %s24
      %p31 = scmp.eq.s32.totalorder %s19, 2
      %p32 = por %p30, %p31
      %p33 = scmp.ne.s32.totalorder %s24, %s25
      %p34 = scmp.eq.s32.totalorder %s19, 0
      %p35 = por %p33, %p34
      %p36 = scmp.ne.s32.totalorder %s24, %s25
      %p37 = scmp.eq.s32.totalorder %s20, 2
      %p38 = por %p36, %p37
      %p40 = scmp.ne.s32.totalorder %s25, %s39
      %p41 = scmp.eq.s32.totalorder %s20, 0
      %p42 = por %p40, %p41
      %s43 = ssub.s32 %s14, %s21
      %p44 = scmp.eq.s32.totalorder %s43, 0
      %s46 = sadd.s32 %s45, 1
      %s47 = scalar_select %p44, %s45, %s46
      %p50 = pneg %p44
      %p51 = scmp.eq.s32.totalorder %s14, 2
      %p52 = por %p50, %p51
      %p53 = scmp.ne.s32.totalorder %s45, %s48
      %p54 = scmp.eq.s32.totalorder %s14, 0
      %p55 = por %p53, %p54
      %p56 = scmp.ne.s32.totalorder %s45, %s48
      %p57 = scmp.eq.s32.totalorder %s19, 2
      %p58 = por %p56, %p57
      %p59 = scmp.ne.s32.totalorder %s48, %s49
      %p60 = scmp.eq.s32.totalorder %s19, 0
      %p61 = por %p59, %p60
      %p62 = scmp.ne.s32.totalorder %s48, %s49
      %p63 = scmp.eq.s32.totalorder %s20, 2
      %p64 = por %p62, %p63
      %p66 = scmp.ne.s32.totalorder %s49, %s65
      %p67 = scmp.eq.s32.totalorder %s20, 0
      %p68 = por %p66, %p67
      %s69 = ssub.s32 %s14, %s21
      %p70 = scmp.eq.s32.totalorder %s69, 0
      %s72 = sadd.s32 %s71, 1
      %s73 = scalar_select %p70, %s71, %s72
      %p76 = pneg %p70
      %p77 = scmp.eq.s32.totalorder %s14, 2
      %p78 = por %p76, %p77
      %p79 = scmp.ne.s32.totalorder %s71, %s74
      %p80 = scmp.eq.s32.totalorder %s14, 0
      %p81 = por %p79, %p80
      %p82 = scmp.ne.s32.totalorder %s71, %s74
      %p83 = scmp.eq.s32.totalorder %s19, 2
      %p84 = por %p82, %p83
      %p85 = scmp.ne.s32.totalorder %s74, %s75
      %p86 = scmp.eq.s32.totalorder %s19, 0
      %p87 = por %p85, %p86
      %p88 = scmp.ne.s32.totalorder %s74, %s75
      %p89 = scmp.eq.s32.totalorder %s20, 2
      %p90 = por %p88, %p89
      %p92 = scmp.ne.s32.totalorder %s75, %s91
      %p93 = scmp.eq.s32.totalorder %s20, 0
      %p94 = por %p92, %p93
      %s96 = sadd.s32 %s95, 1
      %p99 = scmp.eq.s32.totalorder %s14, 2
      %p100 = scmp.ne.s32.totalorder %s95, %s97
      %p101 = scmp.eq.s32.totalorder %s14, 0
      %p102 = por %p100, %p101
      %p103 = scmp.ne.s32.totalorder %s95, %s97
      %p104 = scmp.eq.s32.totalorder %s19, 2
      %p105 = por %p103, %p104
      %p106 = scmp.ne.s32.totalorder %s97, %s98
      %p107 = scmp.eq.s32.totalorder %s19, 0
      %p108 = por %p106, %p107
      %p109 = scmp.ne.s32.totalorder %s97, %s98
      %p110 = scmp.eq.s32.totalorder %s20, 2
      %p111 = por %p109, %p110
      %p113 = scmp.ne.s32.totalorder %s98, %s112
      %p114 = scmp.eq.s32.totalorder %s20, 0
      %p115 = por %p113, %p114
      %p116 = scmp.le.s32.totalorder 1, %s14
      %p117 = scmp.lt.s32.totalorder %s14, 4
      %p118 = pnand %p116, %p117
      %p119 = pneg %p118
      // Predicated region
      $region9: #{mlp_forward_fused.1} parent=5 // pred_check
        _
      $region10: #{mlp_forward_fused.1} parent=5 // pred_check_branch
        %121 = sbr.rel (%p118) target = $region12
      $region11: #{mlp_forward_fused.1} parent=5 // pred_region
        %s122 = ssub.s32 %s14, 1
        // Predicated region
        $region13: #{mlp_forward_fused.1} parent=11 // pred_check
          %p123 = pneg %p35
        $region14: #{mlp_forward_fused.1} parent=11 // pred_check_branch
          %125 = sbr.rel (%p123) target = $region16
        $region15: #{mlp_forward_fused.1} parent=11 // pred_region
          %s127 = ssub.s32 128, 128
          %128 = vsyncadd [#allocation4], %s127
          %s130 = sshll.u32 [#allocation3], 4
          %s131 = int_to_ptr.vmem [resolvable:$true] %s130
          %133 = dma.hbm_to_vmem [thread:$0]  %s0, 128, %s131, [#allocation4]
        $region16: #{mlp_forward_fused.1} parent=11 // pred_fallthru
          _
      $region12: #{mlp_forward_fused.1} parent=5 // pred_fallthru
        _
      %p134 = scmp.lt.s32.totalorder %s14, 3
      // Predicated region
      $region17: #{mlp_forward_fused.1} parent=5 // pred_check
        %p135 = pneg %p134
      $region18: #{mlp_forward_fused.1} parent=5 // pred_check_branch
        %137 = sbr.rel (%p135) target = $region20
      $region19: #{mlp_forward_fused.1} parent=5 // pred_region
        // Predicated region
        $region21: #{mlp_forward_fused.1} parent=19 // pred_check
          %p138 = pneg %p55
        $region22: #{mlp_forward_fused.1} parent=19 // pred_check_branch
          %140 = sbr.rel (%p138) target = $region24
        $region23: #{mlp_forward_fused.1} parent=19 // pred_region
          %s141 = sand.u32 %s45, 1
          %s142 = scalar_lea.sflag [#allocation7], %s141
          %s143 = sand.u32 %s45, 1
          %s144 = smul.addr %s143, 64
          %s145 = scalar_lea.vmem [#allocation6], %s144
          %s147 = ssub.s32 1024, 1024
          %148 = vsyncadd %s142, %s147
          %s149 = smul.addr %s14, 16
          %s150 = smul.addr %s149, 64
          %s151 = scalar_lea.hbm %s1, %s150
          %s152 = sshll.u32 %s145, 4
          %s153 = int_to_ptr.vmem [resolvable:$true] %s152
          %158 = dma.hbm_to_vmem [thread:$0]  %s151, 1024, %s153, %s142, 64, 64, 4
        $region24: #{mlp_forward_fused.1} parent=19 // pred_fallthru
          _
        // Predicated region
        $region25: #{mlp_forward_fused.1} parent=19 // pred_check
          %p159 = pneg %p81
        $region26: #{mlp_forward_fused.1} parent=19 // pred_check_branch
          %161 = sbr.rel (%p159) target = $region28
        $region27: #{mlp_forward_fused.1} parent=19 // pred_region
          %p162 = scmp.lt.s32.totalorder %s14, 2
          %s163 = scalar_select %p162, %s14, 2
          %s164 = scalar_lea.vmem %s2, %s163
        $region28: #{mlp_forward_fused.1} parent=19 // pred_fallthru
          _
      $region20: #{mlp_forward_fused.1} parent=5 // pred_fallthru
        _
      %p165 = scmp.le.s32.totalorder 1, %s14
      %p166 = scmp.lt.s32.totalorder %s14, 4
      %p167 = pnand %p165, %p166
      %p168 = pneg %p167
      // Predicated region
      $region29: #{mlp_forward_fused.1} parent=5 // pred_check
        _
      $region30: #{mlp_forward_fused.1} parent=5 // pred_check_branch
        %170 = sbr.rel (%p167) target = $region32
      $region31: #{mlp_forward_fused.1} parent=5 // pred_region
        %s171 = ssub.s32 %s14, 1
        // Predicated region
        $region33: #{mlp_forward_fused.1} parent=31 // pred_check
          %p172 = pneg %p35
        $region34: #{mlp_forward_fused.1} parent=31 // pred_check_branch
          %174 = sbr.rel (%p172) target = $region36
        $region35: #{mlp_forward_fused.1} parent=31 // pred_region
          %175 = dma.done [#allocation4], 128
        $region36: #{mlp_forward_fused.1} parent=31 // pred_fallthru
          _
        %s176 = sand.u32 %s48, 1
        %s177 = scalar_lea.sflag [#allocation7], %s176
        %s178 = sand.u32 %s48, 1
        %s179 = smul.addr %s178, 64
        %s180 = scalar_lea.vmem [#allocation6], %s179
        // Predicated region
        $region37: #{mlp_forward_fused.1} parent=31 // pred_check
          %p181 = pneg %p61
        $region38: #{mlp_forward_fused.1} parent=31 // pred_check_branch
          %183 = sbr.rel (%p181) target = $region40
        $region39: #{mlp_forward_fused.1} parent=31 // pred_region
          %184 = dma.done %s177, 1024
        $region40: #{mlp_forward_fused.1} parent=31 // pred_fallthru
          _
        %p185 = pneg %p35
        %p186 = pneg %p32
        %s187 = sand.u32 %s48, 1
        %s188 = scalar_lea.sflag [#allocation7], %s187
        %s189 = sand.u32 %s48, 1
        %s190 = smul.addr %s189, 64
        %s191 = scalar_lea.vmem [#allocation6], %s190
        %p192 = pneg %p61
        %p193 = pneg %p58
        %p194 = scmp.lt.s32.totalorder %s19, 2
        %s195 = scalar_select %p194, %s19, 2
        %s196 = scalar_lea.vmem %s2, %s195
        %p197 = pneg %p87
        %p198 = pneg %p84
        %p199 = pneg %p108
        %p200 = pneg %p105
        %p201 = scmp.lt.s32.totalorder %s19, 2
        %s202 = scalar_select %p201, %s19, 2
        %s203 = scalar_lea.vmem %s2, %s202
        %p205 = scmp.eq.s32.totalorder %s19, 0
        // Predicated region
        $region41: #{mlp_forward_fused.1} parent=31 // pred_check
          %p206 = pneg %p205
        $region42: #{mlp_forward_fused.1} parent=31 // pred_check_branch
          %208 = sbr.rel (%p206) target = $region44
        $region43: #{mlp_forward_fused.1} parent=31 // pred_region
          %209 = vst [vmem:[#allocation2] sm:$0xff] 0.0
          %v210 = vld [vmem:[#allocation3] sm:$0xff]
          %vm211 = vcmask 261120
          %212 = vst.msk [vmem:[#allocation2] sm:$0xff] %vm211, %v210
        $region44: #{mlp_forward_fused.1} parent=31 // pred_fallthru
          _
        %v213 = vld [vmem:[#allocation2] sm:$0xff]
        %v214 = vpack.c.bf16 %v213, %v213
        %v215 = vld [vmem:[%s180] sm:$0xf]
        %v216 = vld [vmem:[%s180 + $0x4] sm:$0xf]
        %v217 = vld [vmem:[%s180 + $0x8] sm:$0xf]
        %v218 = vld [vmem:[%s180 + $0xc] sm:$0xf]
        %v219 = vld [vmem:[%s180 + $0x10] sm:$0xf]
        %v220 = vld [vmem:[%s180 + $0x14] sm:$0xf]
        %v221 = vld [vmem:[%s180 + $0x18] sm:$0xf]
        %v222 = vld [vmem:[%s180 + $0x1c] sm:$0xf]
        %v223 = vld [vmem:[%s180 + $0x20] sm:$0xf]
        %v224 = vld [vmem:[%s180 + $0x24] sm:$0xf]
        %v225 = vld [vmem:[%s180 + $0x28] sm:$0xf]
        %v226 = vld [vmem:[%s180 + $0x2c] sm:$0xf]
        %v227 = vld [vmem:[%s180 + $0x30] sm:$0xf]
        %v228 = vld [vmem:[%s180 + $0x34] sm:$0xf]
        %v229 = vld [vmem:[%s180 + $0x38] sm:$0xf]
        %v230 = vld [vmem:[%s180 + $0x3c] sm:$0xf]
        %v231 = vld [vmem:[%s203] sm:$0x1]
        %v233 = vlaneseq
        %v234 = vshrl.u32 %v233, 7
        %v235 = vsub.s32 0, %v234
        %v236 = vrot.slane %v231, %v235
        %v254 = vunpack.c.l.b16 %v215
        %v255 = vunpack.c.l.b16 %v216
        %v256 = vunpack.c.l.b16 %v217
        %v257 = vunpack.c.l.b16 %v218
        %v258 = vunpack.c.l.b16 %v219
        %v259 = vunpack.c.l.b16 %v220
        %v260 = vunpack.c.l.b16 %v221
        %v261 = vunpack.c.l.b16 %v222
        %v262 = vunpack.c.l.b16 %v223
        %v263 = vunpack.c.l.b16 %v224
        %v264 = vunpack.c.l.b16 %v225
        %v265 = vunpack.c.l.b16 %v226
        %v266 = vunpack.c.l.b16 %v227
        %v267 = vunpack.c.l.b16 %v228
        %v268 = vunpack.c.l.b16 %v229
        %v269 = vunpack.c.l.b16 %v230
        %v270 = vpack.c.b16 %v255, %v254
        %v271 = vpack.c.b16 %v257, %v256
        %v272 = vpack.c.b16 %v259, %v258
        %v273 = vpack.c.b16 %v261, %v260
        %v274 = vpack.c.b16 %v263, %v262
        %v275 = vpack.c.b16 %v265, %v264
        %v276 = vpack.c.b16 %v267, %v266
        %v277 = vpack.c.b16 %v269, %v268
        %286 = vmatprep.subr.bf16.mxu0 0
        %287 = vmatpush1.bf16.msra.mxu0 %v277
        %288 = vmatprep.subr.bf16.mxu0 0
        %289 = vmatpush1.bf16.msra.mxu0 %v276
        %290 = vmatprep.subr.bf16.mxu0 0
        %291 = vmatpush1.bf16.msra.mxu0 %v275
        %292 = vmatprep.subr.bf16.mxu0 0
        %293 = vmatpush1.bf16.msra.mxu0 %v274
        %294 = vmatprep.subr.bf16.mxu0 0
        %295 = vmatpush1.bf16.msra.mxu0 %v273
        %296 = vmatprep.subr.bf16.mxu0 0
        %297 = vmatpush1.bf16.msra.mxu0 %v272
        %298 = vmatprep.subr.bf16.mxu0 0
        %299 = vmatpush1.bf16.msra.mxu0 %v271
        %300 = vmatprep.subr.bf16.mxu0 0
        %301 = vmatpush1.bf16.msra.mxu0 %v270
        %302 = vmatprep.subr.bf16.mxu0 0
        %303 = vmatpush2.bf16.msra.mxu0 0
        %304 = vmatprep.subr.bf16.mxu0 0
        %305 = vmatpush2.bf16.msra.mxu0 0
        %306 = vmatprep.subr.bf16.mxu0 0
        %307 = vmatpush2.bf16.msra.mxu0 0
        %308 = vmatprep.subr.bf16.mxu0 0
        %309 = vmatpush2.bf16.msra.mxu0 0
        %310 = vmatprep.subr.bf16.mxu0 0
        %311 = vmatpush2.bf16.msra.mxu0 0
        %312 = vmatprep.subr.bf16.mxu0 0
        %313 = vmatpush2.bf16.msra.mxu0 0
        %314 = vmatprep.subr.bf16.mxu0 0
        %315 = vmatpush2.bf16.msra.mxu0 0
        %316 = vmatprep.subr.bf16.mxu0 0
        %317 = vmatpush2.bf16.msra.mxu0 0
        %318 = vmatprep.mubr.bf16.mxu0 0
        %319 = vmatmul.mubr.bf16.gmra.mxu0 %v214
        %v320 = vpop.f32.mrf.mxu0
        %v321 = vadd.f32 %v236, %v320
        %v322 = vpop.f32.mrf.mxu0
        %v323 = vpop.f32.mrf.mxu0
        %v324 = vpop.f32.mrf.mxu0
        %325 = vdwg.mxu0
        %326 = vst [vmem:[#allocation2] sm:$0xff] %v321
        %p327 = scmp.eq.s32.totalorder %s19, 2
        // Predicated region
        $region45: #{mlp_forward_fused.1} parent=31 // pred_check
          %p328 = pneg %p327
        $region46: #{mlp_forward_fused.1} parent=31 // pred_check_branch
          %330 = sbr.rel (%p328) target = $region48
        $region47: #{mlp_forward_fused.1} parent=31 // pred_region
          %331 = vst [vmem:[#allocation8] sm:$0xff] %v321
        $region48: #{mlp_forward_fused.1} parent=31 // pred_fallthru
          _
        // Predicated region
        $region49: #{mlp_forward_fused.1} parent=31 // pred_check
          %p332 = pneg %p105
        $region50: #{mlp_forward_fused.1} parent=31 // pred_check_branch
          %334 = sbr.rel (%p332) target = $region52
        $region51: #{mlp_forward_fused.1} parent=31 // pred_region
          %s336 = ssub.s32 128, 128
          %337 = vsyncadd [#allocation5], %s336
          %s339 = sshll.u32 [#allocation8], 4
          %s340 = int_to_ptr.vmem [resolvable:$true] %s339
          %342 = dma.vmem_to_hbm [thread:$0]  %s340, 128, %s3, [#allocation5]
        $region52: #{mlp_forward_fused.1} parent=31 // pred_fallthru
          _
        // Predicated region
        $region53: #{mlp_forward_fused.1} parent=31 // pred_check
          %p343 = pneg %p105
        $region54: #{mlp_forward_fused.1} parent=31 // pred_check_branch
          %345 = sbr.rel (%p343) target = $region56
        $region55: #{mlp_forward_fused.1} parent=31 // pred_region
          %346 = dma.done [#allocation5], 128
        $region56: #{mlp_forward_fused.1} parent=31 // pred_fallthru
          _
      $region32: #{mlp_forward_fused.1} parent=5 // pred_fallthru
        _
      %p347 = scmp.le.s32.totalorder 2, %s14
      // Predicated region
      $region57: #{mlp_forward_fused.1} parent=5 // pred_check
        %p348 = pneg %p347
      $region58: #{mlp_forward_fused.1} parent=5 // pred_check_branch
        %350 = sbr.rel (%p348) target = $region60
      $region59: #{mlp_forward_fused.1} parent=5 // pred_region
        %s351 = ssub.s32 %s14, 2
      $region60: #{mlp_forward_fused.1} parent=5 // pred_fallthru
        _
    $region6: #{mlp_forward_fused.1} parent=1 // loop_footer
      %s18 = sadd.s32 1, %s14
    $region7: #{mlp_forward_fused.1} parent=1 // loop_footer_branch
      %13 = sbr.rel target = $region3
    $region8: #{mlp_forward_fused.1} parent=1 // loop_exit
      _
    %352 = vsyncpa [#allocation4], 1
    %s353 = scalar_lea.sflag [#allocation4], 1
    %354 = vsyncpa %s353, 1
    %355 = vsyncpa [#allocation7], 1
    %s356 = scalar_lea.sflag [#allocation7], 1
    %357 = vsyncpa %s356, 1
    %358 = vsyncpa [#allocation5], 1
    %s359 = scalar_lea.sflag [#allocation5], 1
    %360 = vsyncpa %s359, 1

</llo_original>
